<compile_context>
chip_gen: v5e
topology: v5e:2x2
jax: 0.10.0
libtpu: 0.0.40
codegen_flags: <defaults>
</compile_context>

<pallas_src>
import functools

import jax
import jax.numpy as jnp
from jax.experimental import pallas as pl
from jax.experimental.pallas import tpu as pltpu


# ---------------------------------------------------------------------------
# Kernels
# ---------------------------------------------------------------------------

def _flat_bcast_kernel_stride0(bt, pe_ref, o_ref):
    # pe_ref: (1, TC)  lane-dense slice of the flattened positional table
    # o_ref : (BT, TC) output slab: BT batch rows of the same slice
    # Stride-0 sublane-broadcast load -> full-width unmasked store.
    o_ref[...] = pe_ref[pl.ds(0, bt, stride=0), :]


def _flat_bcast_kernel_vpu(pe_ref, o_ref):
    # Fallback (always lowers): explicit vreg broadcast along sublanes.
    o_ref[...] = jnp.broadcast_to(pe_ref[...], o_ref.shape)


def _row_bcast_kernel(pe_ref, o_ref):
    # pe_ref: (RT, D); o_ref: (BT, RT, D).  Used only for large tables whose
    # flattened length is not a multiple of 128.
    o_ref[...] = jnp.broadcast_to(pe_ref[...][None, :, :], o_ref.shape)


# ---------------------------------------------------------------------------
# Tiling helpers
# ---------------------------------------------------------------------------

_TARGET_BLOCK_BYTES = 2 << 20   # per output buffer (double-buffered by Pallas)
_FAST_PATH_BYTES = 1 << 20      # below this, skip the kernel entirely


def _largest_divisor_leq(m, cap):
    """Largest divisor of m that is <= cap (m, cap are positive Python ints)."""
    if cap >= m:
        return m
    best = 1
    d = 1
    while d * d <= m:
        if m % d == 0:
            if d <= cap and d > best:
                best = d
            q = m // d
            if q <= cap and q > best:
                best = q
        d += 1
    return best


# ---------------------------------------------------------------------------
# Forward
# ---------------------------------------------------------------------------

def positional_embedding_forward(x, pe_weight, *, force_pallas=False):
    """Replicates PositionalEmbedding.forward.

    Args:
      x: (B, ...) array; only its leading (batch) dim is used.
      pe_weight: (max_len, d_model) embedding table.
      force_pallas: skip the tiny-shape XLA fast path (for testing).
    Returns:
      (B, max_len, d_model) array with dtype of pe_weight.
    """
    batch = x.shape[0]
    max_len, d_model = pe_weight.shape
    n = max_len * d_model
    itemsize = jnp.dtype(pe_weight.dtype).itemsize
    out_bytes = batch * n * itemsize

    # ---- Tiny-shape fast path --------------------------------------------
    if not force_pallas and out_bytes <= _FAST_PATH_BYTES:
        return jnp.broadcast_to(pe_weight[None], (batch, max_len, d_model))

    # ---- Batch tile (dtype-aware sublane packing) --------------------------
    sub = 8 * max(1, 4 // itemsize)            # f32 -> 8, bf16 -> 16, i8/fp8 -> 32
    max_bt = max(sub, (_TARGET_BLOCK_BYTES // (128 * itemsize)) // sub * sub)
    if batch <= max_bt:
        bt = batch                             # full-dim block: always layout-legal
    else:
        bt = max_bt                            # multiple of `sub`; cdiv grid below
    grid_b = pl.cdiv(batch, bt)

    cost = pl.CostEstimate(
        flops=0, transcendentals=0,
        bytes_accessed=(1 + batch) * n * itemsize)
    cparams = pltpu.CompilerParams(
        # Column/row axis (dim 0) is megacore-sharded so both v7x TensorCores
        # split the lane range; the batch axis is the innermost sequential
        # loop so each table slice is fetched from HBM once per column tile.
        dimension_semantics=("parallel", "arbitrary"))

    def _reshape_out(flat):
        return flat.reshape(batch, max_len, d_model)

    # ---- Path 1: lane-dense flat tiling (n divisible by 128) --------------
    if n % 128 == 0:
        tc_cap = max(128, min(n, (_TARGET_BLOCK_BYTES // (bt * itemsize)) // 128 * 128))
        tc = 128 * _largest_divisor_leq(n // 128, tc_cap // 128)
        if tc < min(512, tc_cap):
            # Degenerate divisor structure (e.g. n = 128 * prime): take a fat
            # non-divisor tile; Pallas masks the partial last block.
            tc = tc_cap
            grid_c = pl.cdiv(n, tc)
        else:
            grid_c = n // tc
        flat_tiling = True
    # ---- Path 2: not 128-divisible but small: one full-extent column block -
    elif bt * n * itemsize <= 2 * _TARGET_BLOCK_BYTES:
        tc = n
        grid_c = 1
        flat_tiling = True
    # ---- Path 3: not 128-divisible and large: 3-D row tiling ---------------
    else:
        flat_tiling = False

    if flat_tiling:
        def _run_flat(kernel):
            return pl.pallas_call(
                kernel,
                out_shape=jax.ShapeDtypeStruct((batch, n), pe_weight.dtype),
                grid_spec=pltpu.PrefetchScalarGridSpec(
                    num_scalar_prefetch=0,
                    grid=(grid_c, grid_b),
                    in_specs=[pl.BlockSpec((1, tc), lambda c, b: (0, c))],
                    out_specs=pl.BlockSpec((bt, tc), lambda c, b: (b, c)),
                ),
                compiler_params=cparams,
                cost_estimate=cost,
            )(pe_weight.reshape(1, n))

        try:
            flat = _run_flat(functools.partial(_flat_bcast_kernel_stride0, bt))
        except Exception:
            # Stride-0 sublane load rejected by this toolchain: use the plain
            # vreg-broadcast kernel (same result, marginally more VPU work).
            flat = _run_flat(_flat_bcast_kernel_vpu)
        return _reshape_out(flat)

    # Row-tiled fallback: blocks (bt, rt, d_model); d_model is the (possibly
    # <128) lane dim, rt a multiple of 8, so VMEM stays bounded on v7x's
    # 64 MiB even for huge, awkwardly-shaped tables.
    row_bytes = d_model * itemsize
    rt_cap = max(8, (_TARGET_BLOCK_BYTES // (bt * row_bytes)) // 8 * 8)
    if max_len <= rt_cap:
        rt = max_len
        grid_r = 1
    else:
        rt = rt_cap
        grid_r = pl.cdiv(max_len, rt)

    return pl.pallas_call(
        _row_bcast_kernel,
        out_shape=jax.ShapeDtypeStruct((batch, max_len, d_model), pe_weight.dtype),
        grid_spec=pltpu.PrefetchScalarGridSpec(
            num_scalar_prefetch=0,
            grid=(grid_r, grid_b),
            in_specs=[pl.BlockSpec((rt, d_model), lambda r, b: (r, 0))],
            out_specs=pl.BlockSpec((bt, rt, d_model), lambda r, b: (b, r, 0)),
        ),
        compiler_params=cparams,
        cost_estimate=cost,
    )(pe_weight)


# ---------------------------------------------------------------------------
# Self-test
# ---------------------------------------------------------------------------

if __name__ == "__main__":
    key = jax.random.PRNGKey(0)
    kx, kw, kw2 = jax.random.split(key, 3)

    # Small shapes consistent with the module's forward.
    batch, seq_len, in_dim = 2, 8, 32
    max_len, d_model = 16, 32

    pe_weight = jax.random.normal(kw, (max_len, d_model), dtype=jnp.float32)
    x = jax.random.normal(kx, (batch, seq_len, in_dim), dtype=jnp.float32)
    ref = jnp.broadcast_to(pe_weight[None], (batch, max_len, d_model))

    # 1) Default path: tiny table -> XLA broadcast fast path.
    out_fast = jax.block_until_ready(positional_embedding_forward(x, pe_weight))
    assert out_fast.shape == (batch, max_len, d_model)
    assert out_fast.dtype == pe_weight.dtype
    assert jnp.array_equal(out_fast, ref)

    # 2) Pallas kernel path: lane-dense flat tiling (n % 128 == 0).
    out_kern = jax.block_until_ready(
        positional_embedding_forward(x, pe_weight, force_pallas=True))
    assert out_kern.shape == (batch, max_len, d_model)
    assert out_kern.dtype == pe_weight.dtype
    assert jnp.array_equal(out_kern, ref)

    # 3) Pallas kernel path: non-128-divisible table (full-extent column block).
    ml2, dm2 = 10, 24
    pe2 = jax.random.normal(kw2, (ml2, dm2), dtype=jnp.float32)
    out2 = jax.block_until_ready(
        positional_embedding_forward(x, pe2, force_pallas=True))
    assert jnp.array_equal(out2, jnp.broadcast_to(pe2[None], (batch, ml2, dm2)))

    print("KERNEL_OK")
</pallas_src>

<mosaic_0001>
module attributes {stable_mosaic.version = 11 : i64} {
  func.func @_flat_bcast_kernel_stride0(%arg0: i32, %arg1: i32, %arg2: memref<1x512xf32, #tpu.memory_space<vmem>>, %arg3: memref<2x512xf32, #tpu.memory_space<vmem>>) attributes {dimension_semantics = [#tpu.dimension_semantics<parallel>, #tpu.dimension_semantics<arbitrary>], iteration_bounds = array<i64: 1, 1>, scalar_prefetch = 0 : i64, scratch_operands = 0 : i64, tpu.core_type = #tpu.core_type<tc>, window_params = [{transform_indices = @transform_0, window_bounds = array<i64: 1, 512>}, {transform_indices = @transform_1, window_bounds = array<i64: 2, 512>}]} {
    %c0 = arith.constant 0 : index
    %c0_0 = arith.constant 0 : index
    %0 = tpu.strided_load %arg2[%c0, %c0_0] {strides = array<i32: 0, 1>} : memref<1x512xf32, #tpu.memory_space<vmem>>, vector<2x512xf32>
    %c0_1 = arith.constant 0 : index
    %c0_2 = arith.constant 0 : index
    %1 = vector.load %arg3[%c0_1, %c0_2] : memref<2x512xf32, #tpu.memory_space<vmem>>, vector<2x512xf32>
    tpu.vector_store %arg3[%c0_1, %c0_2], %0 {strides = array<i32>} : memref<2x512xf32, #tpu.memory_space<vmem>>, vector<2x512xf32>,
    return
  }
  func.func @transform_0(%arg0: i32, %arg1: i32) -> (i32, i32) {
    %c0_i32 = arith.constant 0 : i32
    %c0_i32_0 = arith.constant 0 : i32
    return %c0_i32, %arg0 : i32, i32
  }
  func.func @transform_1(%arg0: i32, %arg1: i32) -> (i32, i32) {
    %c0_i32 = arith.constant 0 : i32
    return %arg1, %arg0 : i32, i32
  }
}

module attributes {stable_mosaic.version = 11 : i64} {
  func.func @_flat_bcast_kernel_vpu(%arg0: i32, %arg1: i32, %arg2: memref<1x512xf32, #tpu.memory_space<vmem>>, %arg3: memref<2x512xf32, #tpu.memory_space<vmem>>) attributes {dimension_semantics = [#tpu.dimension_semantics<parallel>, #tpu.dimension_semantics<arbitrary>], iteration_bounds = array<i64: 1, 1>, scalar_prefetch = 0 : i64, scratch_operands = 0 : i64, tpu.core_type = #tpu.core_type<tc>, window_params = [{transform_indices = @transform_0, window_bounds = array<i64: 1, 512>}, {transform_indices = @transform_1, window_bounds = array<i64: 2, 512>}]} {
    %c0 = arith.constant 0 : index
    %c0_0 = arith.constant 0 : index
    %0 = vector.load %arg2[%c0, %c0_0] : memref<1x512xf32, #tpu.memory_space<vmem>>, vector<1x512xf32>
    %1 = vector.shape_cast %0 : vector<1x512xf32> to vector<1x512xf32>
    %2 = vector.broadcast %1 : vector<1x512xf32> to vector<2x512xf32>
    %c0_1 = arith.constant 0 : index
    %c0_2 = arith.constant 0 : index
    %3 = vector.load %arg3[%c0_1, %c0_2] : memref<2x512xf32, #tpu.memory_space<vmem>>, vector<2x512xf32>
    tpu.vector_store %arg3[%c0_1, %c0_2], %2 {strides = array<i32>} : memref<2x512xf32, #tpu.memory_space<vmem>>, vector<2x512xf32>,
    return
  }
  func.func @transform_0(%arg0: i32, %arg1: i32) -> (i32, i32) {
    %c0_i32 = arith.constant 0 : i32
    %c0_i32_0 = arith.constant 0 : i32
    return %c0_i32, %arg0 : i32, i32
  }
  func.func @transform_1(%arg0: i32, %arg1: i32) -> (i32, i32) {
    %c0_i32 = arith.constant 0 : i32
    return %arg1, %arg0 : i32, i32
  }
}

</mosaic_0001>

<llo_original>
// kernel: tpu_custom_call.1
$region0: #{tpu_custom_call.1}
  #allocation0 [shape = 'u32[]', space=smem, size = 0x4, offset = 0x4, fixed_abs, tag = 'smem constant byte address 0x4 - core index']
  #allocation1 [shape = 'u32[72,128]{1,0:T(1,128)}', space=vmem, size = 0x9000, scoped, tag = 'internal scratch']
  %s0 = inlined_call_operand.hbm [shape: f32[1,512], index: 0, kind: input, shape index: {}]
  %s1 = inlined_call_operand.hbm [shape: f32[2,512], index: 1, kind: output, shape index: {}]
  %s2 = sld [smem:[#allocation0]]
  $region18: #{tpu_custom_call.1} parent=0
    _
  %s4 = ssub.s32 1, %s2
  %s5 = scalar_select 0, %s4, %s2
  $region1: #{tpu_custom_call.1} parent=0
    #allocation2 [shape = 'u8[2048]{0}', space=vmem, size = 0x800, scoped, tag = 'input window, operand 0, single buffered']
    #allocation3 [shape = 's32[1]{0}', space=sflag, size = 0x4, scoped, tag = 'scoped memory for tpu_custom_call.1']
    #allocation4 [shape = 's32[1]{0}', space=sflag, size = 0x4, scoped, tag = 'scoped memory for tpu_custom_call.1']
    #allocation5 [shape = 'u8[4096]{0}', space=vmem, size = 0x1000, scoped, tag = 'output window, operand 0, single buffered']
    %6 = vsyncpa [#allocation3], 0
    %7 = vsyncpa [#allocation4], 0
    // Predicated region
    $region2: #{tpu_custom_call.1} parent=1 // pred_check
      _
    $region3: #{tpu_custom_call.1} parent=1 // pred_check_branch
      %9 = sbr.rel (0) target = $region5
    $region4: #{tpu_custom_call.1} parent=1 // pred_region
      %11 = vsyncadd [#allocation3], 0
      %s13 = sshll.u32 %s0, 4
      %s14 = int_to_ptr.hbm [resolvable:$true] %s13
      %s15 = sshll.u32 [#allocation2], 4
      %s16 = int_to_ptr.vmem [resolvable:$true] %s15
      %18 = dma.hbm_to_vmem [thread:$0]  %s14, 64, %s16, [#allocation3]
    $region5: #{tpu_custom_call.1} parent=1 // pred_fallthru
      _
    // Predicated region
    $region6: #{tpu_custom_call.1} parent=1 // pred_check
      _
    $region7: #{tpu_custom_call.1} parent=1 // pred_check_branch
      %20 = sbr.rel (0) target = $region9
    $region8: #{tpu_custom_call.1} parent=1 // pred_region
      %22 = dma.done [#allocation3], 64
    $region9: #{tpu_custom_call.1} parent=1 // pred_fallthru
      _
    %v23 = vld [vmem:[#allocation2] sm:$0xf]
    %v25 = vperm.slane %v23, 0
    %v26 = vperm.slane %v23, 1
    %v27 = vperm.slane %v23, 2
    %v28 = vperm.slane %v23, 3
    %v29 = vrot.slane %v26, 6
    %v30 = vrot.slane %v27, 4
    %v31 = vrot.slane %v28, 2
    %vm32 = vcmask 1041408
    %v33 = vsel %vm32, %v25, %v29
    %vm34 = vcmask 1045508
    %v35 = vsel %vm34, %v30, %v31
    %vm36 = vcmask 1043456
    %v37 = vsel %vm36, %v33, %v35
    %39 = vst [vmem:[#allocation5] sm:$0xff] %v37
    // Predicated region
    $region10: #{tpu_custom_call.1} parent=1 // pred_check
      _
    $region11: #{tpu_custom_call.1} parent=1 // pred_check_branch
      %41 = sbr.rel (0) target = $region13
    $region12: #{tpu_custom_call.1} parent=1 // pred_region
      %43 = vsyncadd [#allocation4], 0
      %s45 = sshll.u32 [#allocation5], 4
      %s46 = int_to_ptr.vmem [resolvable:$true] %s45
      %s47 = sshll.u32 %s1, 4
      %s48 = int_to_ptr.hbm [resolvable:$true] %s47
      %50 = dma.vmem_to_hbm [thread:$0]  %s46, 128, %s48, [#allocation4]
    $region13: #{tpu_custom_call.1} parent=1 // pred_fallthru
      _
    // Predicated region
    $region14: #{tpu_custom_call.1} parent=1 // pred_check
      _
    $region15: #{tpu_custom_call.1} parent=1 // pred_check_branch
      %52 = sbr.rel (0) target = $region17
    $region16: #{tpu_custom_call.1} parent=1 // pred_region
      %54 = dma.done [#allocation4], 128
    $region17: #{tpu_custom_call.1} parent=1 // pred_fallthru
      _
    %55 = vsyncpa [#allocation3], 1
    %56 = vsyncpa [#allocation4], 1

</llo_original>
